<compile_context>
chip_gen: v5e
topology: v5e:2x2
jax: 0.10.0
libtpu: 0.0.40
codegen_flags: <defaults>
</compile_context>

<pallas_src>
import functools

import jax
import jax.numpy as jnp
from jax import lax
from jax.experimental import pallas as pl
from jax.experimental.pallas import tpu as pltpu

LANE = 128          # vreg lane width
SUB = 8             # vreg sublane count (f32)
CHUNK_ROWS = 128    # in-kernel strip-mine chunk: (128, 128) f32 = 64 KiB


def _round_up(x, m):
    return -(-x // m) * m


def _default_block_rows():
    """Generation-aware streaming block size (rows of 128 lanes)."""
    try:
        kind = jax.devices()[0].device_kind.lower()
    except Exception:
        return 2048
    if "v5 lite" in kind or "v5e" in kind or "v5lite" in kind:
        return 1024   # ~820 GB/s HBM: 1024-row steps already amortize overhead
    if "v6" in kind or "trillium" in kind:
        return 2048
    if "7" in kind:
        return 4096   # ~3.2 TB/s per TC: bigger blocks to amortize 0.35us/step
    return 2048


def _pow_static(x, e, log_x):
    """x ** e with a static Python exponent e (e != 0).

    Small positive integer exponents -> repeated multiplies (VPU only).
    Otherwise exp(e * log_x), reusing the already-computed clamped log.
    (Differs from x**e only for x below e**-100; exactly 0*... for x == 0.)
    """
    e = float(e)
    if e == 1.0:
        return x
    if e.is_integer() and 1.0 < e <= 16.0:
        n = int(e)
        result = None
        base = x
        while n:
            if n & 1:
                result = base if result is None else result * base
            n >>= 1
            if n:
                base = base * base
        return result
    # TODO(synk): if profiling shows EUP-bound on v7x with two fractional
    # exponents, compute this exp via bf16 (EUP bf16 path) and cast back.
    return jnp.exp(e * log_x)


def _chunk_loss(p_raw, t_raw, gamma, zeta):
    """Elementwise asymmetrical focal loss for one chunk (cast to f32 here)."""
    p = p_raw.astype(jnp.float32)
    t = t_raw.astype(jnp.float32)
    q = 1.0 - p
    log_p = jnp.maximum(jnp.log(p), -100.0)     # clamp_min(log(pred), -100)
    log_q = jnp.maximum(jnp.log(q), -100.0)     # clamp_min(log(1-pred), -100)
    pos = t * log_p
    if gamma != 0.0:
        pos = _pow_static(q, gamma, log_q) * pos
    neg = (1.0 - t) * log_q
    if zeta != 0.0:
        neg = _pow_static(p, zeta, log_p) * neg
    return -(pos + neg)


def _afl_kernel(pred_ref, targ_ref, out_ref, *, gamma, zeta, block_rows,
                chunk_rows, valid_rows, needs_mask):
    i = pl.program_id(0)

    def chunk_partial(start_row, nrows, masked):
        p = pred_ref[pl.ds(start_row, nrows), :]
        t = targ_ref[pl.ds(start_row, nrows), :]
        loss = _chunk_loss(p, t, gamma, zeta)
        if masked:
            # Rows past `valid_rows` hold undefined (possibly NaN-producing)
            # data; discard with a select so nothing leaks into the sum.
            row = (i * block_rows + start_row
                   + lax.broadcasted_iota(jnp.int32, (nrows, 1), 0))
            loss = jnp.where(row < valid_rows, loss, 0.0)
        # (nrows,128) -> (8,128): sublane-aligned vreg adds only (no XLU).
        return jnp.sum(loss.reshape(nrows // SUB, SUB, LANE), axis=0)

    def block_partial(masked):
        num_full = block_rows // chunk_rows      # static
        rem = block_rows % chunk_rows            # static, multiple of SUB
        acc = jnp.zeros((SUB, LANE), jnp.float32)
        if num_full == 1:
            acc = acc + chunk_partial(0, chunk_rows, masked)
        elif num_full > 1:
            def body(c, a):
                start = pl.multiple_of(c * chunk_rows, chunk_rows)
                return a + chunk_partial(start, chunk_rows, masked)
            acc = lax.fori_loop(0, num_full, body, acc)
        if rem:
            acc = acc + chunk_partial(num_full * chunk_rows, rem, masked)
        return acc

    if needs_mask:
        last = pl.num_programs(0) - 1

        @pl.when(i != last)
        def _():
            out_ref[0] = block_partial(False)

        @pl.when(i == last)
        def _():
            out_ref[0] = block_partial(True)
    else:
        out_ref[0] = block_partial(False)


def _tail_loss_sum(p, t, gamma, zeta):
    """Reference-formula loss sum for the < 128-element tail (wrapper side)."""
    p = p.astype(jnp.float32)
    t = t.astype(jnp.float32)
    losses = -((1.0 - p) ** gamma * t * jnp.maximum(jnp.log(p), -100.0)
               + p ** zeta * (1.0 - t) * jnp.maximum(jnp.log(1.0 - p), -100.0))
    return jnp.sum(losses)


def _choose_block_rows(rows, requested):
    if rows <= SUB:
        return rows                      # single tiny block == full dim
    br = min(requested, _round_up(rows, SUB))
    # Guarantee >= 2 grid steps when possible so the "parallel" grid axis can
    # shard across both v7x TensorCores / megacore.
    if br >= rows:
        br = _round_up((rows + 1) // 2, SUB)
    return br


def asymmetrical_focal_loss(pred, target, gamma=0.0, zeta=0.0,
                            max_block_rows=None):
    """Pallas TPU implementation of AsymmetricalFocalLoss.forward (mean loss)."""
    assert pred.shape == target.shape
    n = int(pred.size)
    assert n > 0

    if max_block_rows is None:
        max_block_rows = _default_block_rows()
    assert max_block_rows > 0 and max_block_rows % SUB == 0

    # Dtype-preserving flatten (bf16 inputs stream at half the DMA volume).
    pred_flat = pred.reshape(-1)
    targ_flat = target.reshape(-1)

    rows = n // LANE
    rem_elems = n - rows * LANE
    n_bulk = rows * LANE

    # Trailing partial lane-row (< 128 elems): tiny jnp epilogue instead of a
    # full-array pad copy in HBM.
    tail_sum = None
    if rem_elems:
        tail_sum = _tail_loss_sum(pred_flat[n_bulk:], targ_flat[n_bulk:],
                                  gamma, zeta)
        if rows == 0:
            return tail_sum / jnp.float32(n)
        pred_flat = pred_flat[:n_bulk]
        targ_flat = targ_flat[:n_bulk]

    if rows < SUB:
        # Degenerate bulk (< 1 KiB per input): pad up to one (8,128) tile.
        # pred=0 / target=0 padding yields exactly 0 loss for any gamma/zeta.
        pad = SUB * LANE - rows * LANE
        pred_flat = jnp.pad(pred_flat, (0, pad))
        targ_flat = jnp.pad(targ_flat, (0, pad))
        rows = SUB

    pred2 = pred_flat.reshape(rows, LANE)
    targ2 = targ_flat.reshape(rows, LANE)

    block_rows = _choose_block_rows(rows, int(max_block_rows))
    chunk_rows = min(CHUNK_ROWS, block_rows)
    num_blocks = pl.cdiv(rows, block_rows)
    needs_mask = (rows % block_rows) != 0        # ragged last grid block only

    kernel = functools.partial(
        _afl_kernel,
        gamma=float(gamma),
        zeta=float(zeta),
        block_rows=block_rows,
        chunk_rows=chunk_rows,
        valid_rows=rows,
        needs_mask=needs_mask,
    )

    partials = pl.pallas_call(
        kernel,
        out_shape=jax.ShapeDtypeStruct((num_blocks, SUB, LANE), jnp.float32),
        grid_spec=pltpu.PrefetchScalarGridSpec(
            num_scalar_prefetch=0,
            grid=(num_blocks,),
            in_specs=[
                pl.BlockSpec((block_rows, LANE), lambda i: (i, 0)),
                pl.BlockSpec((block_rows, LANE), lambda i: (i, 0)),
            ],
            out_specs=pl.BlockSpec((1, SUB, LANE), lambda i: (i, 0, 0)),
        ),
        compiler_params=pltpu.CompilerParams(
            dimension_semantics=("parallel",),
            vmem_limit_bytes=32 * 1024 * 1024,
        ),
    )(pred2, targ2)

    total = jnp.sum(partials)
    if tail_sum is not None:
        total = total + tail_sum
    return total / jnp.float32(n)


def _reference(pred, target, gamma, zeta):
    p = pred.astype(jnp.float32)
    t = target.astype(jnp.float32)
    losses = -(
        (1.0 - p) ** gamma * t * jnp.maximum(jnp.log(p), -100.0)
        + p ** zeta * (1.0 - t) * jnp.maximum(jnp.log(1.0 - p), -100.0)
    )
    return jnp.mean(losses)


def _check(pred, target, gamma, zeta, **kwargs):
    out = jax.block_until_ready(
        asymmetrical_focal_loss(pred, target, gamma=gamma, zeta=zeta, **kwargs))
    ref = _reference(pred, target, gamma, zeta)
    assert jnp.allclose(out, ref, rtol=1e-5, atol=1e-6), (gamma, zeta, out, ref)
    return out


if __name__ == "__main__":
    key = jax.random.PRNGKey(0)
    ks = jax.random.split(key, 12)

    # Main shape from the module spec: batch=2, channels=4, spatial=16x16.
    B, C, H, W = 2, 4, 16, 16
    pred = jax.nn.sigmoid(jax.random.normal(ks[0], (B, C, H, W), jnp.float32))
    target = jax.random.uniform(ks[1], (B, C, H, W), dtype=jnp.float32)
    _check(pred, target, 2.0, 4.0)    # integer-exponent (repeated-mul) path
    _check(pred, target, 0.0, 0.0)    # default BCE path

    # Ragged last grid block: 3072 elems -> 24 rows, block_rows=16 -> masked tile.
    pred_r = jax.nn.sigmoid(jax.random.normal(ks[2], (1, 3, 32, 32), jnp.float32))
    targ_r = jax.random.uniform(ks[3], (1, 3, 32, 32), dtype=jnp.float32)
    _check(pred_r, targ_r, 2.0, 4.0, max_block_rows=16)

    # n % 128 != 0 (wrapper tail) + tiny-bulk pad + fractional exponents.
    pred_o = jax.nn.sigmoid(jax.random.normal(ks[4], (2, 3, 13, 13), jnp.float32))
    targ_o = jax.random.uniform(ks[5], (2, 3, 13, 13), dtype=jnp.float32)
    _check(pred_o, targ_o, 1.5, 0.5)

    # Smaller than one lane-row (pure wrapper-tail path, no pallas_call).
    pred_t = jax.nn.sigmoid(jax.random.normal(ks[6], (1, 1, 5, 7), jnp.float32))
    targ_t = jax.random.uniform(ks[7], (1, 1, 5, 7), dtype=jnp.float32)
    _check(pred_t, targ_t, 2.0, 0.5)

    # Multi-chunk strip-mined blocks: 65536 elems -> 512 rows -> 2 blocks x
    # 2 fori_loop chunks of 128 rows each.
    pred_b = jax.nn.sigmoid(jax.random.normal(ks[8], (8, 8, 32, 32), jnp.float32))
    targ_b = jax.random.uniform(ks[9], (8, 8, 32, 32), dtype=jnp.float32)
    _check(pred_b, targ_b, 2.0, 4.0)

    # bf16 streaming inputs (halved DMA volume on the HBM-bound path).
    pred_h = jax.nn.sigmoid(
        jax.random.normal(ks[10], (4, 4, 32, 32), jnp.float32)).astype(jnp.bfloat16)
    targ_h = jax.random.uniform(
        ks[11], (4, 4, 32, 32), dtype=jnp.float32).astype(jnp.bfloat16)
    _check(pred_h, targ_h, 2.0, 4.0)

    print("KERNEL_OK")
</pallas_src>

<mosaic_0001>
module attributes {stable_mosaic.version = 11 : i64} {
  func.func @_afl_kernel(%arg0: i32, %arg1: memref<8x128xf32, #tpu.memory_space<vmem>>, %arg2: memref<8x128xf32, #tpu.memory_space<vmem>>, %arg3: memref<1x8x128xf32, #tpu.memory_space<vmem>>) attributes {dimension_semantics = [#tpu.dimension_semantics<parallel>], iteration_bounds = array<i64: 2>, scalar_prefetch = 0 : i64, scratch_operands = 0 : i64, tpu.core_type = #tpu.core_type<tc>, window_params = [{transform_indices = @transform_0, window_bounds = array<i64: 8, 128>}, {transform_indices = @transform_1, window_bounds = array<i64: 8, 128>}, {transform_indices = @transform_2, window_bounds = array<i64: 1, 8, 128>}]} {
    %cst = arith.constant 0.000000e+00 : f32
    %0 = vector.broadcast %cst : f32 to vector<8x128xf32>
    %c0 = arith.constant 0 : index
    %c0_0 = arith.constant 0 : index
    %1 = vector.load %arg1[%c0, %c0_0] : memref<8x128xf32, #tpu.memory_space<vmem>>, vector<8x128xf32>
    %c0_1 = arith.constant 0 : index
    %c0_2 = arith.constant 0 : index
    %2 = vector.load %arg2[%c0_1, %c0_2] : memref<8x128xf32, #tpu.memory_space<vmem>>, vector<8x128xf32>
    %cst_3 = arith.constant 1.000000e+00 : f32
    %3 = vector.broadcast %cst_3 : f32 to vector<8x128xf32>
    %4 = arith.subf %3, %1 : vector<8x128xf32>
    %5 = math.log %1 : vector<8x128xf32>
    %cst_4 = arith.constant -1.000000e+02 : f32
    %6 = vector.broadcast %cst_4 : f32 to vector<8x128xf32>
    %7 = arith.maximumf %5, %6 : vector<8x128xf32>
    %8 = math.log %4 : vector<8x128xf32>
    %cst_5 = arith.constant -1.000000e+02 : f32
    %9 = vector.broadcast %cst_5 : f32 to vector<8x128xf32>
    %10 = arith.maximumf %8, %9 : vector<8x128xf32>
    %11 = arith.mulf %2, %7 : vector<8x128xf32>
    %12 = arith.mulf %4, %4 : vector<8x128xf32>
    %13 = arith.mulf %12, %11 : vector<8x128xf32>
    %cst_6 = arith.constant 1.000000e+00 : f32
    %14 = vector.broadcast %cst_6 : f32 to vector<8x128xf32>
    %15 = arith.subf %14, %2 : vector<8x128xf32>
    %16 = arith.mulf %15, %10 : vector<8x128xf32>
    %17 = arith.mulf %1, %1 : vector<8x128xf32>
    %18 = arith.mulf %17, %17 : vector<8x128xf32>
    %19 = arith.mulf %18, %16 : vector<8x128xf32>
    %20 = arith.addf %13, %19 : vector<8x128xf32>
    %cst_7 = arith.constant 0.000000e+00 : f32
    %21 = vector.broadcast %cst_7 : f32 to vector<8x128xf32>
    %22 = arith.subf %21, %20 : vector<8x128xf32>
    %23 = vector.shape_cast %22 : vector<8x128xf32> to vector<1x8x128xf32>
    %cst_8 = arith.constant dense<0.000000e+00> : vector<8x128xf32>
    %24 = vector.multi_reduction <add>, %23, %cst_8 [0] : vector<1x8x128xf32> to vector<8x128xf32>
    %25 = arith.addf %0, %24 : vector<8x128xf32>
    %c0_9 = arith.constant 0 : index
    %c0_10 = arith.constant 0 : index
    %c0_11 = arith.constant 0 : index
    %26 = vector.load %arg3[%c0_9, %c0_10, %c0_11] : memref<1x8x128xf32, #tpu.memory_space<vmem>>, vector<1x8x128xf32>
    %27 = vector.shape_cast %26 : vector<1x8x128xf32> to vector<8x128xf32>
    %28 = vector.shape_cast %25 : vector<8x128xf32> to vector<1x8x128xf32>
    tpu.vector_store %arg3[%c0_9, %c0_10, %c0_11], %28 {strides = array<i32>} : memref<1x8x128xf32, #tpu.memory_space<vmem>>, vector<1x8x128xf32>,
    return
  }
  func.func @transform_0(%arg0: i32) -> (i32, i32) {
    %c0_i32 = arith.constant 0 : i32
    %c0_i32_0 = arith.constant 0 : i32
    return %arg0, %c0_i32 : i32, i32
  }
  func.func @transform_1(%arg0: i32) -> (i32, i32) {
    %c0_i32 = arith.constant 0 : i32
    %c0_i32_0 = arith.constant 0 : i32
    return %arg0, %c0_i32 : i32, i32
  }
  func.func @transform_2(%arg0: i32) -> (i32, i32, i32) {
    %c0_i32 = arith.constant 0 : i32
    %c0_i32_0 = arith.constant 0 : i32
    %c0_i32_1 = arith.constant 0 : i32
    return %arg0, %c0_i32, %c0_i32_0 : i32, i32, i32
  }
}

</mosaic_0001>

<llo_original>
// kernel: tpu_custom_call.1
$region0: #{tpu_custom_call.1}
  #allocation0 [shape = 'u32[]', space=smem, size = 0x4, offset = 0x4, fixed_abs, tag = 'smem constant byte address 0x4 - core index']
  #allocation1 [shape = 'u32[72,128]{1,0:T(1,128)}', space=vmem, size = 0x9000, scoped, tag = 'internal scratch']
  %s0 = inlined_call_operand.hbm [shape: f32[16,128], index: 0, kind: input, shape index: {}]
  %s1 = inlined_call_operand.hbm [shape: f32[16,128], index: 1, kind: input, shape index: {}]
  %s2 = inlined_call_operand.hbm [shape: f32[2,8,128], index: 2, kind: output, shape index: {}]
  %s3 = sld [smem:[#allocation0]]
  $region49: #{tpu_custom_call.1} parent=0
    _
  %s5 = ssub.s32 1, %s3
  %s6 = scalar_select 0, %s5, %s3
  $region1: #{tpu_custom_call.1} parent=0
    #allocation2 [shape = 'u8[8192]{0}', space=vmem, size = 0x2000, scoped, tag = 'input window, operand 0']
    #allocation3 [shape = 's32[2]{0}', space=sflag, size = 0x8, scoped, tag = 'scoped memory for tpu_custom_call.1']
    #allocation4 [shape = 's32[2]{0}', space=sflag, size = 0x8, scoped, tag = 'scoped memory for tpu_custom_call.1']
    #allocation5 [shape = 'u8[8192]{0}', space=vmem, size = 0x2000, scoped, tag = 'input window, operand 1']
    #allocation6 [shape = 's32[2]{0}', space=sflag, size = 0x8, scoped, tag = 'scoped memory for tpu_custom_call.1']
    #allocation7 [shape = 'u8[8192]{0}', space=vmem, size = 0x2000, scoped, tag = 'output window, operand 0']
    %7 = vsyncpa [#allocation3], 0
    %s8 = scalar_lea.sflag [#allocation3], 1
    %9 = vsyncpa %s8, 0
    %10 = vsyncpa [#allocation6], 0
    %s11 = scalar_lea.sflag [#allocation6], 1
    %12 = vsyncpa %s11, 0
    %13 = vsyncpa [#allocation4], 0
    %s14 = scalar_lea.sflag [#allocation4], 1
    %15 = vsyncpa %s14, 0
    loop: start=0, step=1, limit=4
    $region2: #{tpu_custom_call.1} parent=1 // loop_pre_header
      _
    $region3: #{tpu_custom_call.1} parent=1 // loop_header
      %s17 = sphi 0, %s21
      %p18 = scmp.ge.s32.totalorder %s17, 4
      %s27 = sphi 0, %s29
      %s30 = sphi 0, %s27
      %s31 = sphi 0, %s30
      %s47 = sphi 0, %s31
      %s53 = sphi 0, %s55
      %s56 = sphi 0, %s53
      %s57 = sphi 0, %s56
      %s73 = sphi 0, %s57
      %s79 = sphi 0, %s81
      %s82 = sphi 0, %s79
      %s83 = sphi 0, %s82
      %s99 = sphi 0, %s83
    $region4: #{tpu_custom_call.1} parent=1 // loop_header_branch
      %20 = sbr.rel (%p18) target = $region8
    $region5: #{tpu_custom_call.1} parent=1 // loop_body
      %s22 = ssub.s32 %s17, 1
      %s23 = ssub.s32 %s17, 2
      %s24 = sadd.s32 %s17, 1
      %s25 = ssub.s32 %s17, %s24
      %p26 = scmp.eq.s32.totalorder %s25, 0
      %s28 = sadd.s32 %s27, 1
      %s29 = scalar_select %p26, %s27, %s28
      %p32 = pneg %p26
      %p33 = scmp.eq.s32.totalorder %s17, 1
      %p34 = por %p32, %p33
      %p35 = scmp.ne.s32.totalorder %s27, %s30
      %p36 = scmp.eq.s32.totalorder %s17, 0
      %p37 = por %p35, %p36
      %p38 = scmp.ne.s32.totalorder %s27, %s30
      %p39 = scmp.eq.s32.totalorder %s22, 1
      %p40 = por %p38, %p39
      %p41 = scmp.ne.s32.totalorder %s30, %s31
      %p42 = scmp.eq.s32.totalorder %s22, 0
      %p43 = por %p41, %p42
      %p44 = scmp.ne.s32.totalorder %s30, %s31
      %p45 = scmp.eq.s32.totalorder %s23, 1
      %p46 = por %p44, %p45
      %p48 = scmp.ne.s32.totalorder %s31, %s47
      %p49 = scmp.eq.s32.totalorder %s23, 0
      %p50 = por %p48, %p49
      %s51 = ssub.s32 %s17, %s24
      %p52 = scmp.eq.s32.totalorder %s51, 0
      %s54 = sadd.s32 %s53, 1
      %s55 = scalar_select %p52, %s53, %s54
      %p58 = pneg %p52
      %p59 = scmp.eq.s32.totalorder %s17, 1
      %p60 = por %p58, %p59
      %p61 = scmp.ne.s32.totalorder %s53, %s56
      %p62 = scmp.eq.s32.totalorder %s17, 0
      %p63 = por %p61, %p62
      %p64 = scmp.ne.s32.totalorder %s53, %s56
      %p65 = scmp.eq.s32.totalorder %s22, 1
      %p66 = por %p64, %p65
      %p67 = scmp.ne.s32.totalorder %s56, %s57
      %p68 = scmp.eq.s32.totalorder %s22, 0
      %p69 = por %p67, %p68
      %p70 = scmp.ne.s32.totalorder %s56, %s57
      %p71 = scmp.eq.s32.totalorder %s23, 1
      %p72 = por %p70, %p71
      %p74 = scmp.ne.s32.totalorder %s57, %s73
      %p75 = scmp.eq.s32.totalorder %s23, 0
      %p76 = por %p74, %p75
      %s77 = ssub.s32 %s17, %s24
      %p78 = scmp.eq.s32.totalorder %s77, 0
      %s80 = sadd.s32 %s79, 1
      %s81 = scalar_select %p78, %s79, %s80
      %p84 = pneg %p78
      %p85 = scmp.eq.s32.totalorder %s17, 1
      %p86 = por %p84, %p85
      %p87 = scmp.ne.s32.totalorder %s79, %s82
      %p88 = scmp.eq.s32.totalorder %s17, 0
      %p89 = por %p87, %p88
      %p90 = scmp.ne.s32.totalorder %s79, %s82
      %p91 = scmp.eq.s32.totalorder %s22, 1
      %p92 = por %p90, %p91
      %p93 = scmp.ne.s32.totalorder %s82, %s83
      %p94 = scmp.eq.s32.totalorder %s22, 0
      %p95 = por %p93, %p94
      %p96 = scmp.ne.s32.totalorder %s82, %s83
      %p97 = scmp.eq.s32.totalorder %s23, 1
      %p98 = por %p96, %p97
      %p100 = scmp.ne.s32.totalorder %s83, %s99
      %p101 = scmp.eq.s32.totalorder %s23, 0
      %p102 = por %p100, %p101
      %p103 = scmp.le.s32.totalorder 1, %s17
      %p104 = scmp.lt.s32.totalorder %s17, 3
      %p105 = pnand %p103, %p104
      %p106 = pneg %p105
      // Predicated region
      $region9: #{tpu_custom_call.1} parent=5 // pred_check
        _
      $region10: #{tpu_custom_call.1} parent=5 // pred_check_branch
        %108 = sbr.rel (%p105) target = $region12
      $region11: #{tpu_custom_call.1} parent=5 // pred_region
        %s109 = ssub.s32 %s17, 1
      $region12: #{tpu_custom_call.1} parent=5 // pred_fallthru
        _
      %p110 = scmp.lt.s32.totalorder %s17, 2
      // Predicated region
      $region13: #{tpu_custom_call.1} parent=5 // pred_check
        %p111 = pneg %p110
      $region14: #{tpu_custom_call.1} parent=5 // pred_check_branch
        %113 = sbr.rel (%p111) target = $region16
      $region15: #{tpu_custom_call.1} parent=5 // pred_region
        // Predicated region
        $region17: #{tpu_custom_call.1} parent=15 // pred_check
          %p114 = pneg %p37
        $region18: #{tpu_custom_call.1} parent=15 // pred_check_branch
          %116 = sbr.rel (%p114) target = $region20
        $region19: #{tpu_custom_call.1} parent=15 // pred_region
          %s117 = sand.u32 %s27, 1
          %s118 = scalar_lea.sflag [#allocation3], %s117
          %s119 = sand.u32 %s27, 1
          %s120 = smul.addr %s119, 8
          %s121 = scalar_lea.vmem [#allocation2], %s120
          %123 = vsyncadd %s118, 0
          %s124 = smul.addr %s17, 8
          %s125 = scalar_lea.hbm %s0, %s124
          %s127 = sshll.u32 %s125, 4
          %s128 = int_to_ptr.hbm [resolvable:$true] %s127
          %s129 = sshll.u32 %s121, 4
          %s130 = int_to_ptr.vmem [resolvable:$true] %s129
          %132 = dma.hbm_to_vmem [thread:$0]  %s128, 128, %s130, %s118
        $region20: #{tpu_custom_call.1} parent=15 // pred_fallthru
          _
        // Predicated region
        $region21: #{tpu_custom_call.1} parent=15 // pred_check
          %p133 = pneg %p63
        $region22: #{tpu_custom_call.1} parent=15 // pred_check_branch
          %135 = sbr.rel (%p133) target = $region24
        $region23: #{tpu_custom_call.1} parent=15 // pred_region
          %s136 = sand.u32 %s53, 1
          %s137 = scalar_lea.sflag [#allocation6], %s136
          %s138 = sand.u32 %s53, 1
          %s139 = smul.addr %s138, 8
          %s140 = scalar_lea.vmem [#allocation5], %s139
          %142 = vsyncadd %s137, 0
          %s143 = smul.addr %s17, 8
          %s144 = scalar_lea.hbm %s1, %s143
          %s146 = sshll.u32 %s144, 4
          %s147 = int_to_ptr.hbm [resolvable:$true] %s146
          %s148 = sshll.u32 %s140, 4
          %s149 = int_to_ptr.vmem [resolvable:$true] %s148
          %151 = dma.hbm_to_vmem [thread:$0]  %s147, 128, %s149, %s137
        $region24: #{tpu_custom_call.1} parent=15 // pred_fallthru
          _
      $region16: #{tpu_custom_call.1} parent=5 // pred_fallthru
        _
      %p152 = scmp.le.s32.totalorder 1, %s17
      %p153 = scmp.lt.s32.totalorder %s17, 3
      %p154 = pnand %p152, %p153
      %p155 = pneg %p154
      // Predicated region
      $region25: #{tpu_custom_call.1} parent=5 // pred_check
        _
      $region26: #{tpu_custom_call.1} parent=5 // pred_check_branch
        %157 = sbr.rel (%p154) target = $region28
      $region27: #{tpu_custom_call.1} parent=5 // pred_region
        %s158 = ssub.s32 %s17, 1
        %s159 = sand.u32 %s30, 1
        %s160 = scalar_lea.sflag [#allocation3], %s159
        %s161 = sand.u32 %s30, 1
        %s162 = smul.addr %s161, 8
        %s163 = scalar_lea.vmem [#allocation2], %s162
        // Predicated region
        $region29: #{tpu_custom_call.1} parent=27 // pred_check
          %p164 = pneg %p43
        $region30: #{tpu_custom_call.1} parent=27 // pred_check_branch
          %166 = sbr.rel (%p164) target = $region32
        $region31: #{tpu_custom_call.1} parent=27 // pred_region
          %168 = dma.done %s160, 128
        $region32: #{tpu_custom_call.1} parent=27 // pred_fallthru
          _
        %s169 = sand.u32 %s56, 1
        %s170 = scalar_lea.sflag [#allocation6], %s169
        %s171 = sand.u32 %s56, 1
        %s172 = smul.addr %s171, 8
        %s173 = scalar_lea.vmem [#allocation5], %s172
        // Predicated region
        $region33: #{tpu_custom_call.1} parent=27 // pred_check
          %p174 = pneg %p69
        $region34: #{tpu_custom_call.1} parent=27 // pred_check_branch
          %176 = sbr.rel (%p174) target = $region36
        $region35: #{tpu_custom_call.1} parent=27 // pred_region
          %178 = dma.done %s170, 128
        $region36: #{tpu_custom_call.1} parent=27 // pred_fallthru
          _
        %s179 = sand.u32 %s30, 1
        %s180 = scalar_lea.sflag [#allocation3], %s179
        %s181 = sand.u32 %s30, 1
        %s182 = smul.addr %s181, 8
        %s183 = scalar_lea.vmem [#allocation2], %s182
        %p184 = pneg %p43
        %p185 = pneg %p40
        %s186 = sand.u32 %s56, 1
        %s187 = scalar_lea.sflag [#allocation6], %s186
        %s188 = sand.u32 %s56, 1
        %s189 = smul.addr %s188, 8
        %s190 = scalar_lea.vmem [#allocation5], %s189
        %p191 = pneg %p69
        %p192 = pneg %p66
        %p193 = pneg %p95
        %p194 = pneg %p92
        %s195 = sand.u32 %s82, 1
        %s196 = scalar_lea.sflag [#allocation4], %s195
        %s197 = sand.u32 %s82, 1
        %s198 = smul.addr %s197, 8
        %s199 = scalar_lea.vmem [#allocation7], %s198
        %v200 = vld [vmem:[%s163] sm:$0xff]
        %v201 = vld [vmem:[%s173] sm:$0xff]
        %v202 = vsub.f32 1.0, %v200
        %v203 = vlog2.pop %v200
        %v204 = vmul.f32 %v203, 0.6931472
        %v205 = vmax.f32 %v204, -100.0
        %v206 = vlog2.pop %v202
        %v207 = vmul.f32 %v206, 0.6931472
        %v208 = vmax.f32 %v207, -100.0
        %v209 = vmul.f32 %v201, %v205
        %v210 = vmul.f32 %v202, %v202
        %v211 = vmul.f32 %v210, %v209
        %v212 = vsub.f32 1.0, %v201
        %v213 = vmul.f32 %v212, %v208
        %v214 = vmul.f32 %v200, %v200
        %v215 = vmul.f32 %v214, %v214
        %v216 = vmul.f32 %v215, %v213
        %v217 = vadd.f32 %v211, %v216
        %v218 = vsub.f32 0.0, %v217
        %v219 = vadd.f32 %v218, 0.0
        %v220 = vadd.f32 %v219, 0.0
        %221 = vst [vmem:[%s199] sm:$0xff] %v220
        %s222 = sand.u32 %s82, 1
        %s223 = scalar_lea.sflag [#allocation4], %s222
        %s224 = sand.u32 %s82, 1
        %s225 = smul.addr %s224, 8
        %s226 = scalar_lea.vmem [#allocation7], %s225
        // Predicated region
        $region37: #{tpu_custom_call.1} parent=27 // pred_check
          %p227 = pneg %p92
        $region38: #{tpu_custom_call.1} parent=27 // pred_check_branch
          %229 = sbr.rel (%p227) target = $region40
        $region39: #{tpu_custom_call.1} parent=27 // pred_region
          %231 = vsyncadd %s223, 0
          %s232 = smul.addr %s22, 8
          %s233 = scalar_lea.hbm %s2, %s232
          %s235 = sshll.u32 %s226, 4
          %s236 = int_to_ptr.vmem [resolvable:$true] %s235
          %s237 = sshll.u32 %s233, 4
          %s238 = int_to_ptr.hbm [resolvable:$true] %s237
          %240 = dma.vmem_to_hbm [thread:$0]  %s236, 128, %s238, %s223
        $region40: #{tpu_custom_call.1} parent=27 // pred_fallthru
          _
      $region28: #{tpu_custom_call.1} parent=5 // pred_fallthru
        _
      %p241 = scmp.le.s32.totalorder 2, %s17
      // Predicated region
      $region41: #{tpu_custom_call.1} parent=5 // pred_check
        %p242 = pneg %p241
      $region42: #{tpu_custom_call.1} parent=5 // pred_check_branch
        %244 = sbr.rel (%p242) target = $region44
      $region43: #{tpu_custom_call.1} parent=5 // pred_region
        %s245 = ssub.s32 %s17, 2
        // Predicated region
        $region45: #{tpu_custom_call.1} parent=43 // pred_check
          %p246 = pneg %p98
        $region46: #{tpu_custom_call.1} parent=43 // pred_check_branch
          %248 = sbr.rel (%p246) target = $region48
        $region47: #{tpu_custom_call.1} parent=43 // pred_region
          %s249 = sand.u32 %s83, 1
          %s250 = scalar_lea.sflag [#allocation4], %s249
          %s251 = sand.u32 %s83, 1
          %s252 = smul.addr %s251, 8
          %s253 = scalar_lea.vmem [#allocation7], %s252
          %255 = dma.done %s250, 128
        $region48: #{tpu_custom_call.1} parent=43 // pred_fallthru
          _
      $region44: #{tpu_custom_call.1} parent=5 // pred_fallthru
        _
    $region6: #{tpu_custom_call.1} parent=1 // loop_footer
      %s21 = sadd.s32 1, %s17
    $region7: #{tpu_custom_call.1} parent=1 // loop_footer_branch
      %16 = sbr.rel target = $region3
    $region8: #{tpu_custom_call.1} parent=1 // loop_exit
      _
    %256 = vsyncpa [#allocation3], 1
    %s257 = scalar_lea.sflag [#allocation3], 1
    %258 = vsyncpa %s257, 1
    %259 = vsyncpa [#allocation6], 1
    %s260 = scalar_lea.sflag [#allocation6], 1
    %261 = vsyncpa %s260, 1
    %262 = vsyncpa [#allocation4], 1
    %s263 = scalar_lea.sflag [#allocation4], 1
    %264 = vsyncpa %s263, 1

</llo_original>
